<compile_context>
chip_gen: v6e
topology: v6e:2x2x1
jax: 0.10.0
libtpu: 0.0.40
codegen_flags: <defaults>
</compile_context>

<pallas_src>
import functools

import jax
import jax.numpy as jnp
from jax.experimental import pallas as pl
from jax.experimental.pallas import tpu as pltpu

_LANE = 128


def _round_up(x, m):
    return (x + m - 1) // m * m


def _actor_kernel(x_ref, w1_ref, b1_ref, w2_ref, b2_ref,
                  w3_ref, b3_ref, w4_ref, b4_ref, out_ref):
    """Fused 4-layer MLP: leaky_relu(0.2) x3, then tanh.

    Dots run on the MXU with (possibly bf16) operands and f32 accumulation;
    bias / leaky_relu / tanh are f32. Activations between layers are stored
    only as the bf16 copy that feeds the next dot.
    """
    mxu_dtype = w1_ref.dtype  # bf16 (default) or f32

    def act(v):  # bias already added; fused leaky_relu + cast for the next dot
        return jnp.where(v > 0, v, 0.2 * v).astype(mxu_dtype)

    x = x_ref[...].astype(mxu_dtype)
    h = act(jnp.dot(x, w1_ref[...], preferred_element_type=jnp.float32) + b1_ref[...])
    h = act(jnp.dot(h, w2_ref[...], preferred_element_type=jnp.float32) + b2_ref[...])
    h = act(jnp.dot(h, w3_ref[...], preferred_element_type=jnp.float32) + b3_ref[...])
    h = jnp.dot(h, w4_ref[...], preferred_element_type=jnp.float32) + b4_ref[...]
    out_ref[...] = jnp.tanh(h).astype(out_ref.dtype)  # narrow (block, dim_action) store


def prepare_actor_params(params, mxu_bf16=True):
    """One-time preparation: pad hidden-3 width to 128 lanes (exact zeros) and
    cast weights to the MXU operand dtype. Call once at init, reuse every step.
    """
    w1, b1, w2, b2, w3, b3, w4, b4 = params
    h3 = w3.shape[1]                       # 64
    h3_p = _round_up(h3, _LANE)            # 64 -> 128 (contraction dim of layer 4)

    w3p = jnp.pad(w3, ((0, 0), (0, h3_p - h3)))
    b3p = jnp.pad(b3, ((0, 0), (0, h3_p - h3)))
    w4p = jnp.pad(w4, ((0, h3_p - h3), (0, 0)))   # rows only; output stays narrow

    mxu_dtype = jnp.bfloat16 if mxu_bf16 else jnp.float32
    return (w1.astype(mxu_dtype), b1,
            w2.astype(mxu_dtype), b2,
            w3p.astype(mxu_dtype), b3p,
            w4p.astype(mxu_dtype), b4)


def _pick_block(B, block_b):
    """Batch tile: keep tiles big, but split non-trivial batches into >=2 grid
    steps so the parallel axis can feed both TensorCores on v7x."""
    if B > 16:
        half = _round_up(-(-B // 2), 8)
        return max(8, min(block_b, half))
    return max(8, min(block_b, _round_up(B, 8)))


@functools.partial(jax.jit, static_argnames=("block_b",))
def actor_forward(obs, prepared, block_b=512):
    """obs: (B, dim_observation) float32. Returns (B, dim_action) float32."""
    w1c, b1, w2c, b2, w3c, b3p, w4c, b4 = prepared
    B, dim_obs = obs.shape
    dim_action = w4c.shape[1]

    block = _pick_block(B, block_b)
    grid = (pl.cdiv(B, block),)            # partial last block masked by Pallas

    def full_spec(a):                      # resident weights / biases
        return pl.BlockSpec(a.shape, lambda i: (0, 0))

    out = pl.pallas_call(
        _actor_kernel,
        out_shape=jax.ShapeDtypeStruct((B, dim_action), jnp.float32),
        grid_spec=pltpu.PrefetchScalarGridSpec(
            num_scalar_prefetch=0,
            grid=grid,
            in_specs=[
                pl.BlockSpec((block, dim_obs), lambda i: (i, 0)),  # obs tile
                full_spec(w1c), full_spec(b1),
                full_spec(w2c), full_spec(b2),
                full_spec(w3c), full_spec(b3p),
                full_spec(w4c), full_spec(b4),
            ],
            out_specs=pl.BlockSpec((block, dim_action), lambda i: (i, 0)),
        ),
        compiler_params=pltpu.CompilerParams(
            dimension_semantics=("parallel",)),
    )(obs, w1c, b1, w2c, b2, w3c, b3p, w4c, b4)

    return out


def init_actor_params(key, dim_observation, dim_action):
    """Deterministic init mimicking nn.Linear defaults (uniform +-1/sqrt(fan_in))."""
    dims = [dim_observation, 256, 128, 64, dim_action]
    params = []
    for li in range(4):
        fan_in, fan_out = dims[li], dims[li + 1]
        key, kw, kb = jax.random.split(key, 3)
        bound = 1.0 / jnp.sqrt(jnp.float32(fan_in))
        w = jax.random.uniform(kw, (fan_in, fan_out), jnp.float32, -bound, bound)
        b = jax.random.uniform(kb, (1, fan_out), jnp.float32, -bound, bound)
        params += [w, b]
    return tuple(params)


def actor_forward_ref(obs, params, mxu_bf16=True):
    """Pure-JAX reference (same MXU operand dtype as the kernel)."""
    w1, b1, w2, b2, w3, b3, w4, b4 = params
    dt = jnp.bfloat16 if mxu_bf16 else jnp.float32

    def dot(a, w):
        return jnp.dot(a.astype(dt), w.astype(dt),
                       preferred_element_type=jnp.float32)

    h = dot(obs, w1) + b1
    h = jnp.where(h > 0, h, 0.2 * h)
    h = dot(h, w2) + b2
    h = jnp.where(h > 0, h, 0.2 * h)
    h = dot(h, w3) + b3
    h = jnp.where(h > 0, h, 0.2 * h)
    return jnp.tanh(dot(h, w4) + b4)


if __name__ == "__main__":
    dim_observation = 32
    dim_action = 8
    batch = 8

    key = jax.random.PRNGKey(0)
    key, k_obs = jax.random.split(key)
    obs = jax.random.normal(k_obs, (batch, dim_observation), jnp.float32)
    params = init_actor_params(key, dim_observation, dim_action)

    # One-time weight preparation (pad + bf16 cast hoisted out of the forward).
    prepared = prepare_actor_params(params)
    prepared = jax.tree_util.tree_map(jax.block_until_ready, prepared)

    # Small-batch path: single grid step, whole batch in one tile.
    out = actor_forward(obs, prepared)
    out = jax.block_until_ready(out)
    assert out.shape == (batch, dim_action)

    ref = actor_forward_ref(obs, params)                      # same bf16 MXU operands
    assert jnp.allclose(out, ref, atol=1e-4, rtol=1e-4), "mismatch vs bf16 reference"

    ref_f32 = actor_forward_ref(obs, params, mxu_bf16=False)  # full-f32 module semantics
    assert jnp.allclose(out, ref_f32, atol=5e-2), "mismatch vs f32 reference"

    # Multi-step grid (>=2 steps) with a partial last block, no host padding.
    key, k_obs2 = jax.random.split(key)
    obs2 = jax.random.normal(k_obs2, (200, dim_observation), jnp.float32)
    out2 = jax.block_until_ready(actor_forward(obs2, prepared))
    ref2 = actor_forward_ref(obs2, params)
    assert out2.shape == (200, dim_action)
    assert jnp.allclose(out2, ref2, atol=1e-4, rtol=1e-4), "mismatch on partial block"

    print("KERNEL_OK")
</pallas_src>

<mosaic_0001>
module attributes {stable_mosaic.version = 11 : i64} {
  func.func @_actor_kernel(%arg0: i32, %arg1: memref<8x32xf32, #tpu.memory_space<vmem>>, %arg2: memref<32x256xbf16, #tpu.memory_space<vmem>>, %arg3: memref<1x256xf32, #tpu.memory_space<vmem>>, %arg4: memref<256x128xbf16, #tpu.memory_space<vmem>>, %arg5: memref<1x128xf32, #tpu.memory_space<vmem>>, %arg6: memref<128x128xbf16, #tpu.memory_space<vmem>>, %arg7: memref<1x128xf32, #tpu.memory_space<vmem>>, %arg8: memref<128x8xbf16, #tpu.memory_space<vmem>>, %arg9: memref<1x8xf32, #tpu.memory_space<vmem>>, %arg10: memref<8x8xf32, #tpu.memory_space<vmem>>) attributes {dimension_semantics = [#tpu.dimension_semantics<parallel>], iteration_bounds = array<i64: 1>, scalar_prefetch = 0 : i64, scratch_operands = 0 : i64, tpu.core_type = #tpu.core_type<tc>, window_params = [{transform_indices = @transform_0, window_bounds = array<i64: 8, 32>}, {pipeline_mode = #tpu.pipeline_mode<synchronous>, transform_indices = @transform_1, window_bounds = array<i64: 32, 256>}, {pipeline_mode = #tpu.pipeline_mode<synchronous>, transform_indices = @transform_2, window_bounds = array<i64: 1, 256>}, {pipeline_mode = #tpu.pipeline_mode<synchronous>, transform_indices = @transform_3, window_bounds = array<i64: 256, 128>}, {pipeline_mode = #tpu.pipeline_mode<synchronous>, transform_indices = @transform_4, window_bounds = array<i64: 1, 128>}, {pipeline_mode = #tpu.pipeline_mode<synchronous>, transform_indices = @transform_5, window_bounds = array<i64: 128, 128>}, {pipeline_mode = #tpu.pipeline_mode<synchronous>, transform_indices = @transform_6, window_bounds = array<i64: 1, 128>}, {pipeline_mode = #tpu.pipeline_mode<synchronous>, transform_indices = @transform_7, window_bounds = array<i64: 128, 8>}, {pipeline_mode = #tpu.pipeline_mode<synchronous>, transform_indices = @transform_8, window_bounds = array<i64: 1, 8>}, {transform_indices = @transform_9, window_bounds = array<i64: 8, 8>}]} {
    %c0 = arith.constant 0 : index
    %c0_0 = arith.constant 0 : index
    %0 = vector.load %arg1[%c0, %c0_0] : memref<8x32xf32, #tpu.memory_space<vmem>>, vector<8x32xf32>
    %1 = arith.truncf %0 : vector<8x32xf32> to vector<8x32xbf16>
    %c0_1 = arith.constant 0 : index
    %c0_2 = arith.constant 0 : index
    %2 = vector.load %arg2[%c0_1, %c0_2] : memref<32x256xbf16, #tpu.memory_space<vmem>>, vector<32x256xbf16>
    %cst = arith.constant dense<0.000000e+00> : vector<8x256xf32>
    %3 = tpu.matmul %1, %2, %cst {dimension_numbers = #tpu.dot_dimension_numbers<[1], [0], [0], [1], [0, 0, 1, 1], [], []>} : vector<8x32xbf16>, vector<32x256xbf16>, vector<8x256xf32> -> vector<8x256xf32>
    %c0_3 = arith.constant 0 : index
    %c0_4 = arith.constant 0 : index
    %4 = vector.load %arg3[%c0_3, %c0_4] : memref<1x256xf32, #tpu.memory_space<vmem>>, vector<1x256xf32>
    %5 = vector.broadcast %4 : vector<1x256xf32> to vector<8x256xf32>
    %6 = arith.addf %3, %5 : vector<8x256xf32>
    %cst_5 = arith.constant 0.000000e+00 : f32
    %7 = vector.broadcast %cst_5 : f32 to vector<8x256xf32>
    %8 = arith.cmpf ogt, %6, %7 : vector<8x256xf32>
    %cst_6 = arith.constant 2.000000e-01 : f32
    %9 = vector.broadcast %cst_6 : f32 to vector<8x256xf32>
    %10 = arith.mulf %9, %6 : vector<8x256xf32>
    %11 = arith.select %8, %6, %10 : vector<8x256xi1>, vector<8x256xf32>
    %12 = arith.truncf %11 : vector<8x256xf32> to vector<8x256xbf16>
    %c0_7 = arith.constant 0 : index
    %c0_8 = arith.constant 0 : index
    %13 = vector.load %arg4[%c0_7, %c0_8] : memref<256x128xbf16, #tpu.memory_space<vmem>>, vector<256x128xbf16>
    %cst_9 = arith.constant dense<0.000000e+00> : vector<8x128xf32>
    %14 = tpu.matmul %12, %13, %cst_9 {dimension_numbers = #tpu.dot_dimension_numbers<[1], [0], [0], [1], [0, 0, 1, 1], [], []>} : vector<8x256xbf16>, vector<256x128xbf16>, vector<8x128xf32> -> vector<8x128xf32>
    %c0_10 = arith.constant 0 : index
    %c0_11 = arith.constant 0 : index
    %15 = vector.load %arg5[%c0_10, %c0_11] : memref<1x128xf32, #tpu.memory_space<vmem>>, vector<1x128xf32>
    %16 = vector.broadcast %15 : vector<1x128xf32> to vector<8x128xf32>
    %17 = arith.addf %14, %16 : vector<8x128xf32>
    %cst_12 = arith.constant 0.000000e+00 : f32
    %18 = vector.broadcast %cst_12 : f32 to vector<8x128xf32>
    %19 = arith.cmpf ogt, %17, %18 : vector<8x128xf32>
    %cst_13 = arith.constant 2.000000e-01 : f32
    %20 = vector.broadcast %cst_13 : f32 to vector<8x128xf32>
    %21 = arith.mulf %20, %17 : vector<8x128xf32>
    %22 = arith.select %19, %17, %21 : vector<8x128xi1>, vector<8x128xf32>
    %23 = arith.truncf %22 : vector<8x128xf32> to vector<8x128xbf16>
    %c0_14 = arith.constant 0 : index
    %c0_15 = arith.constant 0 : index
    %24 = vector.load %arg6[%c0_14, %c0_15] : memref<128x128xbf16, #tpu.memory_space<vmem>>, vector<128x128xbf16>
    %cst_16 = arith.constant dense<0.000000e+00> : vector<8x128xf32>
    %25 = tpu.matmul %23, %24, %cst_16 {dimension_numbers = #tpu.dot_dimension_numbers<[1], [0], [0], [1], [0, 0, 1, 1], [], []>} : vector<8x128xbf16>, vector<128x128xbf16>, vector<8x128xf32> -> vector<8x128xf32>
    %c0_17 = arith.constant 0 : index
    %c0_18 = arith.constant 0 : index
    %26 = vector.load %arg7[%c0_17, %c0_18] : memref<1x128xf32, #tpu.memory_space<vmem>>, vector<1x128xf32>
    %27 = vector.broadcast %26 : vector<1x128xf32> to vector<8x128xf32>
    %28 = arith.addf %25, %27 : vector<8x128xf32>
    %cst_19 = arith.constant 0.000000e+00 : f32
    %29 = vector.broadcast %cst_19 : f32 to vector<8x128xf32>
    %30 = arith.cmpf ogt, %28, %29 : vector<8x128xf32>
    %cst_20 = arith.constant 2.000000e-01 : f32
    %31 = vector.broadcast %cst_20 : f32 to vector<8x128xf32>
    %32 = arith.mulf %31, %28 : vector<8x128xf32>
    %33 = arith.select %30, %28, %32 : vector<8x128xi1>, vector<8x128xf32>
    %34 = arith.truncf %33 : vector<8x128xf32> to vector<8x128xbf16>
    %c0_21 = arith.constant 0 : index
    %c0_22 = arith.constant 0 : index
    %35 = vector.load %arg8[%c0_21, %c0_22] : memref<128x8xbf16, #tpu.memory_space<vmem>>, vector<128x8xbf16>
    %cst_23 = arith.constant dense<0.000000e+00> : vector<8x8xf32>
    %36 = tpu.matmul %34, %35, %cst_23 {dimension_numbers = #tpu.dot_dimension_numbers<[1], [0], [0], [1], [0, 0, 1, 1], [], []>} : vector<8x128xbf16>, vector<128x8xbf16>, vector<8x8xf32> -> vector<8x8xf32>
    %c0_24 = arith.constant 0 : index
    %c0_25 = arith.constant 0 : index
    %37 = vector.load %arg9[%c0_24, %c0_25] : memref<1x8xf32, #tpu.memory_space<vmem>>, vector<1x8xf32>
    %38 = vector.broadcast %37 : vector<1x8xf32> to vector<8x8xf32>
    %39 = arith.addf %36, %38 : vector<8x8xf32>
    %40 = math.tanh %39 : vector<8x8xf32>
    %c0_26 = arith.constant 0 : index
    %c0_27 = arith.constant 0 : index
    %41 = vector.load %arg10[%c0_26, %c0_27] : memref<8x8xf32, #tpu.memory_space<vmem>>, vector<8x8xf32>
    tpu.vector_store %arg10[%c0_26, %c0_27], %40 {strides = array<i32>} : memref<8x8xf32, #tpu.memory_space<vmem>>, vector<8x8xf32>,
    return
  }
  func.func @transform_0(%arg0: i32) -> (i32, i32) {
    %c0_i32 = arith.constant 0 : i32
    %c0_i32_0 = arith.constant 0 : i32
    return %arg0, %c0_i32 : i32, i32
  }
  func.func @transform_1(%arg0: i32) -> (i32, i32) {
    %c0_i32 = arith.constant 0 : i32
    %c0_i32_0 = arith.constant 0 : i32
    %c0_i32_1 = arith.constant 0 : i32
    return %c0_i32, %c0_i32_0 : i32, i32
  }
  func.func @transform_2(%arg0: i32) -> (i32, i32) {
    %c0_i32 = arith.constant 0 : i32
    %c0_i32_0 = arith.constant 0 : i32
    %c0_i32_1 = arith.constant 0 : i32
    return %c0_i32, %c0_i32_0 : i32, i32
  }
  func.func @transform_3(%arg0: i32) -> (i32, i32) {
    %c0_i32 = arith.constant 0 : i32
    %c0_i32_0 = arith.constant 0 : i32
    %c0_i32_1 = arith.constant 0 : i32
    return %c0_i32, %c0_i32_0 : i32, i32
  }
  func.func @transform_4(%arg0: i32) -> (i32, i32) {
    %c0_i32 = arith.constant 0 : i32
    %c0_i32_0 = arith.constant 0 : i32
    %c0_i32_1 = arith.constant 0 : i32
    return %c0_i32, %c0_i32_0 : i32, i32
  }
  func.func @transform_5(%arg0: i32) -> (i32, i32) {
    %c0_i32 = arith.constant 0 : i32
    %c0_i32_0 = arith.constant 0 : i32
    %c0_i32_1 = arith.constant 0 : i32
    return %c0_i32, %c0_i32_0 : i32, i32
  }
  func.func @transform_6(%arg0: i32) -> (i32, i32) {
    %c0_i32 = arith.constant 0 : i32
    %c0_i32_0 = arith.constant 0 : i32
    %c0_i32_1 = arith.constant 0 : i32
    return %c0_i32, %c0_i32_0 : i32, i32
  }
  func.func @transform_7(%arg0: i32) -> (i32, i32) {
    %c0_i32 = arith.constant 0 : i32
    %c0_i32_0 = arith.constant 0 : i32
    %c0_i32_1 = arith.constant 0 : i32
    return %c0_i32, %c0_i32_0 : i32, i32
  }
  func.func @transform_8(%arg0: i32) -> (i32, i32) {
    %c0_i32 = arith.constant 0 : i32
    %c0_i32_0 = arith.constant 0 : i32
    %c0_i32_1 = arith.constant 0 : i32
    return %c0_i32, %c0_i32_0 : i32, i32
  }
  func.func @transform_9(%arg0: i32) -> (i32, i32) {
    %c0_i32 = arith.constant 0 : i32
    %c0_i32_0 = arith.constant 0 : i32
    return %arg0, %c0_i32 : i32, i32
  }
}

</mosaic_0001>

<llo_original>
// kernel: actor_forward.1
$region0: #{actor_forward.1}
  #allocation0 [shape = 'u32[]', space=smem, size = 0x4, offset = 0x4, fixed_abs, tag = 'smem constant byte address 0x4 - core index']
  #allocation1 [shape = 'u32[144,128]{1,0:T(1,128)}', space=vmem, size = 0x12000, scoped, tag = 'internal scratch']
  %s0 = inlined_call_operand.vmem [shape: f32[8,32], index: 0, kind: input, shape index: {}]
  %s1 = inlined_call_operand.hbm [shape: bf16[32,256], index: 1, kind: input, shape index: {}]
  %s2 = inlined_call_operand.vmem [shape: f32[1,256], index: 2, kind: input, shape index: {}]
  %s3 = inlined_call_operand.hbm [shape: bf16[256,128], index: 3, kind: input, shape index: {}]
  %s4 = inlined_call_operand.hbm [shape: f32[1,128], index: 4, kind: input, shape index: {}]
  %s5 = inlined_call_operand.vmem [shape: bf16[128,128], index: 5, kind: input, shape index: {}]
  %s6 = inlined_call_operand.hbm [shape: f32[1,128], index: 6, kind: input, shape index: {}]
  %s7 = inlined_call_operand.vmem [shape: bf16[128,8], index: 7, kind: input, shape index: {}]
  %s8 = inlined_call_operand.vmem [shape: f32[1,8], index: 8, kind: input, shape index: {}]
  %s9 = inlined_call_operand.hbm [shape: f32[8,8], index: 9, kind: output, shape index: {}]
  %s10 = sld [smem:[#allocation0]]
  $region62: #{actor_forward.1} parent=0
    _
  %s12 = ssub.s32 1, %s10
  %s13 = scalar_select 0, %s12, %s10
  $region1: #{actor_forward.1} parent=0
    #allocation2 [shape = 'u8[16384]{0}', space=vmem, size = 0x4000, scoped, tag = 'input window, operand 1, single buffered']
    #allocation3 [shape = 's32[1]{0}', space=sflag, size = 0x4, scoped, tag = 'scoped memory for actor_forward.1']
    #allocation4 [shape = 's32[1]{0}', space=sflag, size = 0x4, scoped, tag = 'scoped memory for actor_forward.1']
    #allocation5 [shape = 'u8[65536]{0}', space=vmem, size = 0x10000, scoped, tag = 'input window, operand 3, single buffered']
    #allocation6 [shape = 's32[1]{0}', space=sflag, size = 0x4, scoped, tag = 'scoped memory for actor_forward.1']
    #allocation7 [shape = 'u8[512]{0}', space=vmem, size = 0x400, scoped, tag = 'input window, operand 4, single buffered']
    #allocation8 [shape = 'u8[512]{0}', space=vmem, size = 0x400, scoped, tag = 'input window, operand 6, single buffered']
    #allocation9 [shape = 's32[1]{0}', space=sflag, size = 0x4, scoped, tag = 'scoped memory for actor_forward.1']
    #allocation10 [shape = 'u8[4096]{0}', space=vmem, size = 0x1000, scoped, tag = 'output window, operand 0, single buffered']
    %14 = vsyncpa [#allocation3], 0
    %15 = vsyncpa [#allocation6], 0
    %16 = vsyncpa [#allocation9], 0
    %17 = vsyncpa [#allocation4], 0
    // Predicated region
    $region2: #{actor_forward.1} parent=1 // pred_check
      _
    $region3: #{actor_forward.1} parent=1 // pred_check_branch
      %19 = sbr.rel (0) target = $region5
    $region4: #{actor_forward.1} parent=1 // pred_region
      _
    $region5: #{actor_forward.1} parent=1 // pred_fallthru
      _
    // Predicated region
    $region6: #{actor_forward.1} parent=1 // pred_check
      _
    $region7: #{actor_forward.1} parent=1 // pred_check_branch
      %21 = sbr.rel (0) target = $region9
    $region8: #{actor_forward.1} parent=1 // pred_region
      %s23 = ssub.s32 512, 512
      %24 = vsyncadd [#allocation3], %s23
      %s25 = sshll.u32 [#allocation2], 4
      %s26 = int_to_ptr.vmem [resolvable:$true] %s25
      %31 = dma.hbm_to_vmem [thread:$0]  %s1, 512, %s26, [#allocation3], 128, 128, 8
    $region9: #{actor_forward.1} parent=1 // pred_fallthru
      _
    // Predicated region
    $region10: #{actor_forward.1} parent=1 // pred_check
      _
    $region11: #{actor_forward.1} parent=1 // pred_check_branch
      %33 = sbr.rel (0) target = $region13
    $region12: #{actor_forward.1} parent=1 // pred_region
      _
    $region13: #{actor_forward.1} parent=1 // pred_fallthru
      _
    // Predicated region
    $region14: #{actor_forward.1} parent=1 // pred_check
      _
    $region15: #{actor_forward.1} parent=1 // pred_check_branch
      %35 = sbr.rel (0) target = $region17
    $region16: #{actor_forward.1} parent=1 // pred_region
      %s37 = ssub.s32 2048, 2048
      %38 = vsyncadd [#allocation6], %s37
      %s39 = sshll.u32 [#allocation5], 4
      %s40 = int_to_ptr.vmem [resolvable:$true] %s39
      %45 = dma.hbm_to_vmem [thread:$0]  %s3, 2048, %s40, [#allocation6], 64, 64, 4
    $region17: #{actor_forward.1} parent=1 // pred_fallthru
      _
    // Predicated region
    $region18: #{actor_forward.1} parent=1 // pred_check
      _
    $region19: #{actor_forward.1} parent=1 // pred_check_branch
      %47 = sbr.rel (0) target = $region21
    $region20: #{actor_forward.1} parent=1 // pred_region
      %s49 = ssub.s32 16, 16
      %50 = vsyncadd [#allocation6], %s49
      %s52 = sshll.u32 [#allocation7], 4
      %s53 = int_to_ptr.vmem [resolvable:$true] %s52
      %55 = dma.hbm_to_vmem [thread:$0]  %s4, 16, %s53, [#allocation6]
    $region21: #{actor_forward.1} parent=1 // pred_fallthru
      _
    // Predicated region
    $region22: #{actor_forward.1} parent=1 // pred_check
      _
    $region23: #{actor_forward.1} parent=1 // pred_check_branch
      %57 = sbr.rel (0) target = $region25
    $region24: #{actor_forward.1} parent=1 // pred_region
      _
    $region25: #{actor_forward.1} parent=1 // pred_fallthru
      _
    // Predicated region
    $region26: #{actor_forward.1} parent=1 // pred_check
      _
    $region27: #{actor_forward.1} parent=1 // pred_check_branch
      %59 = sbr.rel (0) target = $region29
    $region28: #{actor_forward.1} parent=1 // pred_region
      %s61 = ssub.s32 16, 16
      %62 = vsyncadd [#allocation9], %s61
      %s64 = sshll.u32 [#allocation8], 4
      %s65 = int_to_ptr.vmem [resolvable:$true] %s64
      %67 = dma.hbm_to_vmem [thread:$0]  %s6, 16, %s65, [#allocation9]
    $region29: #{actor_forward.1} parent=1 // pred_fallthru
      _
    // Predicated region
    $region30: #{actor_forward.1} parent=1 // pred_check
      _
    $region31: #{actor_forward.1} parent=1 // pred_check_branch
      %69 = sbr.rel (0) target = $region33
    $region32: #{actor_forward.1} parent=1 // pred_region
      _
    $region33: #{actor_forward.1} parent=1 // pred_fallthru
      _
    // Predicated region
    $region34: #{actor_forward.1} parent=1 // pred_check
      _
    $region35: #{actor_forward.1} parent=1 // pred_check_branch
      %71 = sbr.rel (0) target = $region37
    $region36: #{actor_forward.1} parent=1 // pred_region
      _
    $region37: #{actor_forward.1} parent=1 // pred_fallthru
      _
    // Predicated region
    $region38: #{actor_forward.1} parent=1 // pred_check
      _
    $region39: #{actor_forward.1} parent=1 // pred_check_branch
      %73 = sbr.rel (0) target = $region41
    $region40: #{actor_forward.1} parent=1 // pred_region
      %74 = dma.done [#allocation3], 512
    $region41: #{actor_forward.1} parent=1 // pred_fallthru
      _
    // Predicated region
    $region42: #{actor_forward.1} parent=1 // pred_check
      _
    $region43: #{actor_forward.1} parent=1 // pred_check_branch
      %76 = sbr.rel (0) target = $region45
    $region44: #{actor_forward.1} parent=1 // pred_region
      %77 = dma.done [#allocation6], 2048
    $region45: #{actor_forward.1} parent=1 // pred_fallthru
      _
    // Predicated region
    $region46: #{actor_forward.1} parent=1 // pred_check
      _
    $region47: #{actor_forward.1} parent=1 // pred_check_branch
      %79 = sbr.rel (0) target = $region49
    $region48: #{actor_forward.1} parent=1 // pred_region
      %80 = dma.done [#allocation6], 16
    $region49: #{actor_forward.1} parent=1 // pred_fallthru
      _
    // Predicated region
    $region50: #{actor_forward.1} parent=1 // pred_check
      _
    $region51: #{actor_forward.1} parent=1 // pred_check_branch
      %82 = sbr.rel (0) target = $region53
    $region52: #{actor_forward.1} parent=1 // pred_region
      %83 = dma.done [#allocation9], 16
    $region53: #{actor_forward.1} parent=1 // pred_fallthru
      _
    %v85 = vld [vmem:[%s0] sm:$0xff]
    %v86 = vpack.c.bf16 %v85, %v85
    %v87 = vld [vmem:[#allocation2] sm:$0xff]
    %v88 = vld [vmem:[#allocation2 + $0x8] sm:$0xff]
    %v89 = vld [vmem:[#allocation2 + $0x10] sm:$0xff]
    %v90 = vld [vmem:[#allocation2 + $0x18] sm:$0xff]
    %v91 = vld [vmem:[%s2] sm:$0x3]
    %v93 = vlaneseq
    %v94 = vshrl.u32 %v93, 7
    %v95 = vsub.s32 0, %v94
    %v96 = vrot.slane %v91, %v95
    %v97 = vlaneseq
    %v98 = vshrl.u32 %v97, 7
    %v99 = vsub.s32 1, %v98
    %v100 = vrot.slane %v91, %v99
    %v107 = vunpack.c.l.b16 %v87
    %v108 = vunpack.c.h.b16 %v87
    %v109 = vunpack.c.l.b16 %v88
    %v110 = vunpack.c.h.b16 %v88
    %v111 = vunpack.c.l.b16 %v89
    %v112 = vunpack.c.h.b16 %v89
    %v113 = vunpack.c.l.b16 %v90
    %v114 = vunpack.c.h.b16 %v90
    %v115 = vpack.c.b16 %v109, %v107
    %v116 = vpack.c.b16 %v110, %v108
    %v117 = vpack.c.b16 %v113, %v111
    %v118 = vpack.c.b16 %v114, %v112
    %vm123 = vcmask 261120
    %v125 = vsel %vm123, %v86, 0
    %127 = vmatprep.subr.bf16.mxu0 0
    %128 = vmatpush1.bf16.msra.mxu0 0
    %129 = vmatprep.subr.bf16.mxu0 0
    %130 = vmatpush1.bf16.msra.mxu0 0
    %131 = vmatprep.subr.bf16.mxu0 0
    %132 = vmatpush1.bf16.msra.mxu0 0
    %133 = vmatprep.subr.bf16.mxu0 0
    %134 = vmatpush1.bf16.msra.mxu0 0
    %135 = vmatprep.subr.bf16.mxu0 0
    %136 = vmatpush1.bf16.msra.mxu0 0
    %137 = vmatprep.subr.bf16.mxu0 0
    %138 = vmatpush1.bf16.msra.mxu0 0
    %139 = vmatprep.subr.bf16.mxu0 %v118
    %140 = vmatpush1.bf16.msra.mxu0 %v117
    %141 = vmatprep.subr.bf16.mxu0 %v116
    %142 = vmatpush1.bf16.msra.mxu0 %v115
    %143 = vmatprep.subr.bf16.mxu0 0
    %144 = vmatpush2.bf16.msra.mxu0 0
    %145 = vmatprep.subr.bf16.mxu0 0
    %146 = vmatpush2.bf16.msra.mxu0 0
    %147 = vmatprep.subr.bf16.mxu0 0
    %148 = vmatpush2.bf16.msra.mxu0 0
    %149 = vmatprep.subr.bf16.mxu0 0
    %150 = vmatpush2.bf16.msra.mxu0 0
    %151 = vmatprep.subr.bf16.mxu0 0
    %152 = vmatpush2.bf16.msra.mxu0 0
    %153 = vmatprep.subr.bf16.mxu0 0
    %154 = vmatpush2.bf16.msra.mxu0 0
    %155 = vmatprep.subr.bf16.mxu0 0
    %156 = vmatpush2.bf16.msra.mxu0 0
    %157 = vmatprep.subr.bf16.mxu0 0
    %158 = vmatpush2.bf16.msra.mxu0 0
    %159 = vmatprep.mubr.bf16.mxu0 0
    %160 = vmatmul.mubr.bf16.gmra.mxu0 %v125
    %v161 = vpop.f32.mrf.mxu0
    %v162 = vadd.f32 %v96, %v161
    %v163 = vpop.f32.mrf.mxu0
    %v164 = vadd.f32 %v100, %v163
    %v165 = vpop.f32.mrf.mxu0
    %v166 = vpop.f32.mrf.mxu0
    %167 = vdwg.mxu0
    %vm168 = vcmp.gt.f32.partialorder %v162, 0.0
    %vm169 = vcmp.gt.f32.partialorder %v164, 0.0
    %v170 = vmul.f32 %v162, 0.2
    %v171 = vmul.f32 %v164, 0.2
    %v172 = vsel %vm168, %v162, %v170
    %v173 = vsel %vm169, %v164, %v171
    %v174 = vpack.c.bf16 %v172, %v172
    %v175 = vpack.c.bf16 %v173, %v173
    %v176 = vld [vmem:[#allocation5] sm:$0xf]
    %v177 = vld [vmem:[#allocation5 + $0x4] sm:$0xf]
    %v178 = vld [vmem:[#allocation5 + $0x8] sm:$0xf]
    %v179 = vld [vmem:[#allocation5 + $0xc] sm:$0xf]
    %v180 = vld [vmem:[#allocation5 + $0x10] sm:$0xf]
    %v181 = vld [vmem:[#allocation5 + $0x14] sm:$0xf]
    %v182 = vld [vmem:[#allocation5 + $0x18] sm:$0xf]
    %v183 = vld [vmem:[#allocation5 + $0x1c] sm:$0xf]
    %v184 = vld [vmem:[#allocation5 + $0x20] sm:$0xf]
    %v185 = vld [vmem:[#allocation5 + $0x24] sm:$0xf]
    %v186 = vld [vmem:[#allocation5 + $0x28] sm:$0xf]
    %v187 = vld [vmem:[#allocation5 + $0x2c] sm:$0xf]
    %v188 = vld [vmem:[#allocation5 + $0x30] sm:$0xf]
    %v189 = vld [vmem:[#allocation5 + $0x34] sm:$0xf]
    %v190 = vld [vmem:[#allocation5 + $0x38] sm:$0xf]
    %v191 = vld [vmem:[#allocation5 + $0x3c] sm:$0xf]
    %v192 = vld [vmem:[#allocation5 + $0x40] sm:$0xf]
    %v193 = vld [vmem:[#allocation5 + $0x44] sm:$0xf]
    %v194 = vld [vmem:[#allocation5 + $0x48] sm:$0xf]
    %v195 = vld [vmem:[#allocation5 + $0x4c] sm:$0xf]
    %v196 = vld [vmem:[#allocation5 + $0x50] sm:$0xf]
    %v197 = vld [vmem:[#allocation5 + $0x54] sm:$0xf]
    %v198 = vld [vmem:[#allocation5 + $0x58] sm:$0xf]
    %v199 = vld [vmem:[#allocation5 + $0x5c] sm:$0xf]
    %v200 = vld [vmem:[#allocation5 + $0x60] sm:$0xf]
    %v201 = vld [vmem:[#allocation5 + $0x64] sm:$0xf]
    %v202 = vld [vmem:[#allocation5 + $0x68] sm:$0xf]
    %v203 = vld [vmem:[#allocation5 + $0x6c] sm:$0xf]
    %v204 = vld [vmem:[#allocation5 + $0x70] sm:$0xf]
    %v205 = vld [vmem:[#allocation5 + $0x74] sm:$0xf]
    %v206 = vld [vmem:[#allocation5 + $0x78] sm:$0xf]
    %v207 = vld [vmem:[#allocation5 + $0x7c] sm:$0xf]
    %v208 = vld [vmem:[#allocation7] sm:$0x1]
    %v210 = vlaneseq
    %v211 = vshrl.u32 %v210, 7
    %v212 = vsub.s32 0, %v211
    %v213 = vrot.slane %v208, %v212
    %v247 = vunpack.c.l.b16 %v176
    %v248 = vunpack.c.l.b16 %v177
    %v249 = vunpack.c.l.b16 %v178
    %v250 = vunpack.c.l.b16 %v179
    %v251 = vunpack.c.l.b16 %v180
    %v252 = vunpack.c.l.b16 %v181
    %v253 = vunpack.c.l.b16 %v182
    %v254 = vunpack.c.l.b16 %v183
    %v255 = vunpack.c.l.b16 %v184
    %v256 = vunpack.c.l.b16 %v185
    %v257 = vunpack.c.l.b16 %v186
    %v258 = vunpack.c.l.b16 %v187
    %v259 = vunpack.c.l.b16 %v188
    %v260 = vunpack.c.l.b16 %v189
    %v261 = vunpack.c.l.b16 %v190
    %v262 = vunpack.c.l.b16 %v191
    %v263 = vunpack.c.l.b16 %v192
    %v264 = vunpack.c.l.b16 %v193
    %v265 = vunpack.c.l.b16 %v194
    %v266 = vunpack.c.l.b16 %v195
    %v267 = vunpack.c.l.b16 %v196
    %v268 = vunpack.c.l.b16 %v197
    %v269 = vunpack.c.l.b16 %v198
    %v270 = vunpack.c.l.b16 %v199
    %v271 = vunpack.c.l.b16 %v200
    %v272 = vunpack.c.l.b16 %v201
    %v273 = vunpack.c.l.b16 %v202
    %v274 = vunpack.c.l.b16 %v203
    %v275 = vunpack.c.l.b16 %v204
    %v276 = vunpack.c.l.b16 %v205
    %v277 = vunpack.c.l.b16 %v206
    %v278 = vunpack.c.l.b16 %v207
    %v279 = vpack.c.b16 %v248, %v247
    %v280 = vpack.c.b16 %v250, %v249
    %v281 = vpack.c.b16 %v252, %v251
    %v282 = vpack.c.b16 %v254, %v253
    %v283 = vpack.c.b16 %v256, %v255
    %v284 = vpack.c.b16 %v258, %v257
    %v285 = vpack.c.b16 %v260, %v259
    %v286 = vpack.c.b16 %v262, %v261
    %v287 = vpack.c.b16 %v264, %v263
    %v288 = vpack.c.b16 %v266, %v265
    %v289 = vpack.c.b16 %v268, %v267
    %v290 = vpack.c.b16 %v270, %v269
    %v291 = vpack.c.b16 %v272, %v271
    %v292 = vpack.c.b16 %v274, %v273
    %v293 = vpack.c.b16 %v276, %v275
    %v294 = vpack.c.b16 %v278, %v277
    %311 = vmatprep.subr.bf16.mxu0 0
    %312 = vmatpush1.bf16.msra.mxu0 %v286
    %313 = vmatprep.subr.bf16.mxu0 0
    %314 = vmatpush1.bf16.msra.mxu0 %v285
    %315 = vmatprep.subr.bf16.mxu0 0
    %316 = vmatpush1.bf16.msra.mxu0 %v284
    %317 = vmatprep.subr.bf16.mxu0 0
    %318 = vmatpush1.bf16.msra.mxu0 %v283
    %319 = vmatprep.subr.bf16.mxu0 0
    %320 = vmatpush1.bf16.msra.mxu0 %v282
    %321 = vmatprep.subr.bf16.mxu0 0
    %322 = vmatpush1.bf16.msra.mxu0 %v281
    %323 = vmatprep.subr.bf16.mxu0 0
    %324 = vmatpush1.bf16.msra.mxu0 %v280
    %325 = vmatprep.subr.bf16.mxu0 0
    %326 = vmatpush1.bf16.msra.mxu0 %v279
    %327 = vmatprep.subr.bf16.mxu0 0
    %328 = vmatpush2.bf16.msra.mxu0 %v294
    %329 = vmatprep.subr.bf16.mxu0 0
    %330 = vmatpush2.bf16.msra.mxu0 %v293
    %331 = vmatprep.subr.bf16.mxu0 0
    %332 = vmatpush2.bf16.msra.mxu0 %v292
    %333 = vmatprep.subr.bf16.mxu0 0
    %334 = vmatpush2.bf16.msra.mxu0 %v291
    %335 = vmatprep.subr.bf16.mxu0 0
    %336 = vmatpush2.bf16.msra.mxu0 %v290
    %337 = vmatprep.subr.bf16.mxu0 0
    %338 = vmatpush2.bf16.msra.mxu0 %v289
    %339 = vmatprep.subr.bf16.mxu0 0
    %340 = vmatpush2.bf16.msra.mxu0 %v288
    %341 = vmatprep.subr.bf16.mxu0 0
    %342 = vmatpush2.bf16.msra.mxu0 %v287
    %343 = vmatprep.mubr.bf16.mxu0 %v175
    %344 = vmatmul.mubr.bf16.gmra.mxu0 %v174
    %v345 = vpop.f32.mrf.mxu0
    %v346 = vadd.f32 %v213, %v345
    %v347 = vpop.f32.mrf.mxu0
    %v348 = vpop.f32.mrf.mxu0
    %v349 = vpop.f32.mrf.mxu0
    %350 = vdwg.mxu0
    %vm351 = vcmp.gt.f32.partialorder %v346, 0.0
    %v352 = vmul.f32 %v346, 0.2
    %v353 = vsel %vm351, %v346, %v352
    %v354 = vpack.c.bf16 %v353, %v353
    %v355 = vld [vmem:[%s5] sm:$0xf]
    %v356 = vld [vmem:[%s5 + $0x4] sm:$0xf]
    %v357 = vld [vmem:[%s5 + $0x8] sm:$0xf]
    %v358 = vld [vmem:[%s5 + $0xc] sm:$0xf]
    %v359 = vld [vmem:[%s5 + $0x10] sm:$0xf]
    %v360 = vld [vmem:[%s5 + $0x14] sm:$0xf]
    %v361 = vld [vmem:[%s5 + $0x18] sm:$0xf]
    %v362 = vld [vmem:[%s5 + $0x1c] sm:$0xf]
    %v363 = vld [vmem:[%s5 + $0x20] sm:$0xf]
    %v364 = vld [vmem:[%s5 + $0x24] sm:$0xf]
    %v365 = vld [vmem:[%s5 + $0x28] sm:$0xf]
    %v366 = vld [vmem:[%s5 + $0x2c] sm:$0xf]
    %v367 = vld [vmem:[%s5 + $0x30] sm:$0xf]
    %v368 = vld [vmem:[%s5 + $0x34] sm:$0xf]
    %v369 = vld [vmem:[%s5 + $0x38] sm:$0xf]
    %v370 = vld [vmem:[%s5 + $0x3c] sm:$0xf]
    %v371 = vld [vmem:[#allocation8] sm:$0x1]
    %v373 = vlaneseq
    %v374 = vshrl.u32 %v373, 7
    %v375 = vsub.s32 0, %v374
    %v376 = vrot.slane %v371, %v375
    %v394 = vunpack.c.l.b16 %v355
    %v395 = vunpack.c.l.b16 %v356
    %v396 = vunpack.c.l.b16 %v357
    %v397 = vunpack.c.l.b16 %v358
    %v398 = vunpack.c.l.b16 %v359
    %v399 = vunpack.c.l.b16 %v360
    %v400 = vunpack.c.l.b16 %v361
    %v401 = vunpack.c.l.b16 %v362
    %v402 = vunpack.c.l.b16 %v363
    %v403 = vunpack.c.l.b16 %v364
    %v404 = vunpack.c.l.b16 %v365
    %v405 = vunpack.c.l.b16 %v366
    %v406 = vunpack.c.l.b16 %v367
    %v407 = vunpack.c.l.b16 %v368
    %v408 = vunpack.c.l.b16 %v369
    %v409 = vunpack.c.l.b16 %v370
    %v410 = vpack.c.b16 %v395, %v394
    %v411 = vpack.c.b16 %v397, %v396
    %v412 = vpack.c.b16 %v399, %v398
    %v413 = vpack.c.b16 %v401, %v400
    %v414 = vpack.c.b16 %v403, %v402
    %v415 = vpack.c.b16 %v405, %v404
    %v416 = vpack.c.b16 %v407, %v406
    %v417 = vpack.c.b16 %v409, %v408
    %426 = vmatprep.subr.bf16.mxu0 0
    %427 = vmatpush1.bf16.msra.mxu0 %v417
    %428 = vmatprep.subr.bf16.mxu0 0
    %429 = vmatpush1.bf16.msra.mxu0 %v416
    %430 = vmatprep.subr.bf16.mxu0 0
    %431 = vmatpush1.bf16.msra.mxu0 %v415
    %432 = vmatprep.subr.bf16.mxu0 0
    %433 = vmatpush1.bf16.msra.mxu0 %v414
    %434 = vmatprep.subr.bf16.mxu0 0
    %435 = vmatpush1.bf16.msra.mxu0 %v413
    %436 = vmatprep.subr.bf16.mxu0 0
    %437 = vmatpush1.bf16.msra.mxu0 %v412
    %438 = vmatprep.subr.bf16.mxu0 0
    %439 = vmatpush1.bf16.msra.mxu0 %v411
    %440 = vmatprep.subr.bf16.mxu0 0
    %441 = vmatpush1.bf16.msra.mxu0 %v410
    %442 = vmatprep.subr.bf16.mxu0 0
    %443 = vmatpush2.bf16.msra.mxu0 0
    %444 = vmatprep.subr.bf16.mxu0 0
    %445 = vmatpush2.bf16.msra.mxu0 0
    %446 = vmatprep.subr.bf16.mxu0 0
    %447 = vmatpush2.bf16.msra.mxu0 0
    %448 = vmatprep.subr.bf16.mxu0 0
    %449 = vmatpush2.bf16.msra.mxu0 0
    %450 = vmatprep.subr.bf16.mxu0 0
    %451 = vmatpush2.bf16.msra.mxu0 0
    %452 = vmatprep.subr.bf16.mxu0 0
    %453 = vmatpush2.bf16.msra.mxu0 0
    %454 = vmatprep.subr.bf16.mxu0 0
    %455 = vmatpush2.bf16.msra.mxu0 0
    %456 = vmatprep.subr.bf16.mxu0 0
    %457 = vmatpush2.bf16.msra.mxu0 0
    %458 = vmatprep.mubr.bf16.mxu0 0
    %459 = vmatmul.mubr.bf16.gmra.mxu0 %v354
    %v460 = vpop.f32.mrf.mxu0
    %v461 = vadd.f32 %v376, %v460
    %v462 = vpop.f32.mrf.mxu0
    %v463 = vpop.f32.mrf.mxu0
    %v464 = vpop.f32.mrf.mxu0
    %465 = vdwg.mxu0
    %vm466 = vcmp.gt.f32.partialorder %v461, 0.0
    %v467 = vmul.f32 %v461, 0.2
    %v468 = vsel %vm466, %v461, %v467
    %v469 = vpack.c.bf16 %v468, %v468
    %v470 = vld [vmem:[%s7] sm:$0xf]
    %v471 = vld [vmem:[%s7 + $0x4] sm:$0xf]
    %v472 = vld [vmem:[%s7 + $0x8] sm:$0xf]
    %v473 = vld [vmem:[%s7 + $0xc] sm:$0xf]
    %v474 = vld [vmem:[%s7 + $0x10] sm:$0xf]
    %v475 = vld [vmem:[%s7 + $0x14] sm:$0xf]
    %v476 = vld [vmem:[%s7 + $0x18] sm:$0xf]
    %v477 = vld [vmem:[%s7 + $0x1c] sm:$0xf]
    %v478 = vld [vmem:[%s7 + $0x20] sm:$0xf]
    %v479 = vld [vmem:[%s7 + $0x24] sm:$0xf]
    %v480 = vld [vmem:[%s7 + $0x28] sm:$0xf]
    %v481 = vld [vmem:[%s7 + $0x2c] sm:$0xf]
    %v482 = vld [vmem:[%s7 + $0x30] sm:$0xf]
    %v483 = vld [vmem:[%s7 + $0x34] sm:$0xf]
    %v484 = vld [vmem:[%s7 + $0x38] sm:$0xf]
    %v485 = vld [vmem:[%s7 + $0x3c] sm:$0xf]
    %v486 = vld [vmem:[%s8] sm:$0x1]
    %v488 = vlaneseq
    %v489 = vshrl.u32 %v488, 7
    %v490 = vsub.s32 0, %v489
    %v491 = vrot.slane %v486, %v490
    %v509 = vunpack.c.l.b16 %v470
    %v510 = vunpack.c.l.b16 %v471
    %v511 = vunpack.c.l.b16 %v472
    %v512 = vunpack.c.l.b16 %v473
    %v513 = vunpack.c.l.b16 %v474
    %v514 = vunpack.c.l.b16 %v475
    %v515 = vunpack.c.l.b16 %v476
    %v516 = vunpack.c.l.b16 %v477
    %v517 = vunpack.c.l.b16 %v478
    %v518 = vunpack.c.l.b16 %v479
    %v519 = vunpack.c.l.b16 %v480
    %v520 = vunpack.c.l.b16 %v481
    %v521 = vunpack.c.l.b16 %v482
    %v522 = vunpack.c.l.b16 %v483
    %v523 = vunpack.c.l.b16 %v484
    %v524 = vunpack.c.l.b16 %v485
    %v525 = vpack.c.b16 %v510, %v509
    %v526 = vpack.c.b16 %v512, %v511
    %v527 = vpack.c.b16 %v514, %v513
    %v528 = vpack.c.b16 %v516, %v515
    %v529 = vpack.c.b16 %v518, %v517
    %v530 = vpack.c.b16 %v520, %v519
    %v531 = vpack.c.b16 %v522, %v521
    %v532 = vpack.c.b16 %v524, %v523
    %541 = vmatprep.subr.bf16.mxu0 0
    %542 = vmatpush1.bf16.msra.mxu0 %v532
    %543 = vmatprep.subr.bf16.mxu0 0
    %544 = vmatpush1.bf16.msra.mxu0 %v531
    %545 = vmatprep.subr.bf16.mxu0 0
    %546 = vmatpush1.bf16.msra.mxu0 %v530
    %547 = vmatprep.subr.bf16.mxu0 0
    %548 = vmatpush1.bf16.msra.mxu0 %v529
    %549 = vmatprep.subr.bf16.mxu0 0
    %550 = vmatpush1.bf16.msra.mxu0 %v528
    %551 = vmatprep.subr.bf16.mxu0 0
    %552 = vmatpush1.bf16.msra.mxu0 %v527
    %553 = vmatprep.subr.bf16.mxu0 0
    %554 = vmatpush1.bf16.msra.mxu0 %v526
    %555 = vmatprep.subr.bf16.mxu0 0
    %556 = vmatpush1.bf16.msra.mxu0 %v525
    %557 = vmatprep.subr.bf16.mxu0 0
    %558 = vmatpush2.bf16.msra.mxu0 0
    %559 = vmatprep.subr.bf16.mxu0 0
    %560 = vmatpush2.bf16.msra.mxu0 0
    %561 = vmatprep.subr.bf16.mxu0 0
    %562 = vmatpush2.bf16.msra.mxu0 0
    %563 = vmatprep.subr.bf16.mxu0 0
    %564 = vmatpush2.bf16.msra.mxu0 0
    %565 = vmatprep.subr.bf16.mxu0 0
    %566 = vmatpush2.bf16.msra.mxu0 0
    %567 = vmatprep.subr.bf16.mxu0 0
    %568 = vmatpush2.bf16.msra.mxu0 0
    %569 = vmatprep.subr.bf16.mxu0 0
    %570 = vmatpush2.bf16.msra.mxu0 0
    %571 = vmatprep.subr.bf16.mxu0 0
    %572 = vmatpush2.bf16.msra.mxu0 0
    %573 = vmatprep.mubr.bf16.mxu0 0
    %574 = vmatmul.mubr.bf16.gmra.mxu0 %v469
    %v575 = vpop.f32.mrf.mxu0
    %v576 = vadd.f32 %v491, %v575
    %v577 = vpop.f32.mrf.mxu0
    %v578 = vpop.f32.mrf.mxu0
    %v579 = vpop.f32.mrf.mxu0
    %580 = vdwg.mxu0
    %v581 = vtanh.pop %v576
    %vm582 = vcmask 64512
    %583 = vst.msk [vmem:[#allocation10] sm:$0xff] %vm582, %v581
    // Predicated region
    $region54: #{actor_forward.1} parent=1 // pred_check
      _
    $region55: #{actor_forward.1} parent=1 // pred_check_branch
      %585 = sbr.rel (0) target = $region57
    $region56: #{actor_forward.1} parent=1 // pred_region
      %s587 = ssub.s32 128, 128
      %588 = vsyncadd [#allocation4], %s587
      %s590 = sshll.u32 [#allocation10], 4
      %s591 = int_to_ptr.vmem [resolvable:$true] %s590
      %593 = dma.vmem_to_hbm [thread:$0]  %s591, 128, %s9, [#allocation4]
    $region57: #{actor_forward.1} parent=1 // pred_fallthru
      _
    // Predicated region
    $region58: #{actor_forward.1} parent=1 // pred_check
      _
    $region59: #{actor_forward.1} parent=1 // pred_check_branch
      %595 = sbr.rel (0) target = $region61
    $region60: #{actor_forward.1} parent=1 // pred_region
      %596 = dma.done [#allocation4], 128
    $region61: #{actor_forward.1} parent=1 // pred_fallthru
      _
    %597 = vsyncpa [#allocation3], 1
    %598 = vsyncpa [#allocation6], 1
    %599 = vsyncpa [#allocation9], 1
    %600 = vsyncpa [#allocation4], 1

</llo_original>
